<compile_context>
chip_gen: v7x
topology: tpu7x:2x2x1
jax: 0.10.0
libtpu: 0.0.40
codegen_flags: <defaults>
</compile_context>

<pallas_src>
import functools

import jax
import jax.numpy as jnp
from jax.experimental import pallas as pl
from jax.experimental.pallas import tpu as pltpu


def _round_up(x, m):
    return ((x + m - 1) // m) * m


def _pooler_end_logits_kernel(xt_ref, w0_ref, pvec_ref, w1_ref, b1_ref, o_ref):
    # Feature-major: xt is (H_in, rows), weights keep PyTorch (out, in) layout.
    # dense_0:  x^T (H, rows) = W0 (H, H) @ input^T (H, rows)
    x = jnp.dot(w0_ref[...], xt_ref[...], preferred_element_type=jnp.float32)

    b0 = pvec_ref[:, 0:1]        # (H, 1) -> broadcast across the lane (row) axis
    gamma = pvec_ref[:, 1:2]
    beta = pvec_ref[:, 2:3]

    x = jnp.tanh(x + b0)

    # LayerNorm over the feature axis (axis 0 in feature-major layout),
    # biased variance, eps = 1e-5 (nn.LayerNorm default), affine.
    # TODO(synk): confirm eps against the source model config (some BERT
    # configs use 1e-12).
    mean = jnp.mean(x, axis=0, keepdims=True)
    var = jnp.mean(jnp.square(x - mean), axis=0, keepdims=True)
    x = (x - mean) * jax.lax.rsqrt(var + 1e-5)
    x = x * gamma + beta

    # dense_1:  logits^T (C, rows) = W1 (C, H) @ x (H, rows)
    out = jnp.dot(w1_ref[...], x.astype(w1_ref.dtype),
                  preferred_element_type=jnp.float32) + b1_ref[...]
    o_ref[...] = out.astype(o_ref.dtype)


@functools.partial(jax.jit, static_argnames=("row_tile", "input_dtype"))
def pooler_end_logits(hidden_states, start_positions, params,
                      row_tile=512, input_dtype=None):
    """hidden_states: (B, S, Hb) f32 ; start_positions: (B, S, C) f32.

    Hb + C == hidden_size of the module (the concat is done in the wrapper).
    """
    B, S, Hb = hidden_states.shape
    C = start_positions.shape[-1]
    H = Hb + C                              # hidden_size of the module
    M = B * S                               # total rows

    # Lane-dense row tile: multiple of 128, but no larger than the padded M.
    row_tile = max(128, _round_up(row_tile, 128))
    row_tile = min(row_tile, _round_up(M, 128))
    M_pad = _round_up(M, row_tile)

    # Fold the concat here so dense_0 is a single matmul in the kernel.
    x2d = jnp.concatenate(
        [hidden_states.reshape(M, Hb), start_positions.reshape(M, C)], axis=-1)
    if M_pad != M:
        x2d = jnp.pad(x2d, ((0, M_pad - M), (0, 0)))
    x_t = x2d.T                             # (H, M_pad): feature-major, rows on lanes

    # PyTorch Linear stores (out, in); in feature-major form it is used as-is.
    w0 = params["w0"]                       # (H, H)
    w1 = params["w1"]                       # (C, H)
    # Pack the per-feature vectors into one (H, 3) block: [b0 | gamma | beta].
    pvec = jnp.stack(
        [params["b0"], params["gamma"], params["beta"]], axis=-1).astype(jnp.float32)
    b1 = params["b1"].reshape(C, 1).astype(jnp.float32)

    if input_dtype is not None:             # e.g. jnp.bfloat16 on v6e / v7x
        x_t = x_t.astype(input_dtype)
        w0 = w0.astype(input_dtype)
        w1 = w1.astype(input_dtype)

    grid = (M_pad // row_tile,)

    out_t = pl.pallas_call(
        _pooler_end_logits_kernel,
        out_shape=jax.ShapeDtypeStruct((C, M_pad), hidden_states.dtype),
        grid_spec=pltpu.PrefetchScalarGridSpec(
            num_scalar_prefetch=0,
            grid=grid,
            in_specs=[
                pl.BlockSpec((H, row_tile), lambda i: (0, i)),   # x^T rows
                pl.BlockSpec((H, H), lambda i: (0, 0)),          # W0 (grid-invariant)
                pl.BlockSpec((H, 3), lambda i: (0, 0)),          # [b0|gamma|beta]
                pl.BlockSpec((C, H), lambda i: (0, 0)),          # W1
                pl.BlockSpec((C, 1), lambda i: (0, 0)),          # b1
            ],
            out_specs=pl.BlockSpec((C, row_tile), lambda i: (0, i)),
        ),
        compiler_params=pltpu.CompilerParams(
            dimension_semantics=("parallel",)),
    )(x_t, w0, pvec, w1, b1)

    # Un-transpose / un-pad the lane-dense output slab in the wrapper.
    return out_t[:, :M].T.reshape(B, S, C)


def _reference(hidden_states, start_positions, params):
    x = jnp.concatenate([hidden_states, start_positions], axis=-1)
    x = x @ params["w0"].T + params["b0"]
    x = jnp.tanh(x)
    mean = jnp.mean(x, axis=-1, keepdims=True)
    var = jnp.mean(jnp.square(x - mean), axis=-1, keepdims=True)
    x = (x - mean) / jnp.sqrt(var + 1e-5)
    x = x * params["gamma"] + params["beta"]
    return x @ params["w1"].T + params["b1"]


if __name__ == "__main__":
    # Small shapes consistent with the module:
    #   bert hidden Hb = 24, num_classes C = 8  ->  hidden_size H = 32
    B, S, Hb, C = 2, 8, 24, 8
    H = Hb + C

    key = jax.random.PRNGKey(0)
    k_h, k_s, k0w, k0b, k1w, k1b, kg, kb = jax.random.split(key, 8)

    hidden_states = jax.random.normal(k_h, (B, S, Hb), dtype=jnp.float32)
    start_positions = jax.random.normal(k_s, (B, S, C), dtype=jnp.float32)

    params = {
        "w0": jax.random.normal(k0w, (H, H), dtype=jnp.float32) * 0.1,   # nn.Linear(H, H).weight
        "b0": jax.random.normal(k0b, (H,), dtype=jnp.float32) * 0.1,
        "gamma": 1.0 + 0.05 * jax.random.normal(kg, (H,), dtype=jnp.float32),
        "beta": 0.05 * jax.random.normal(kb, (H,), dtype=jnp.float32),
        "w1": jax.random.normal(k1w, (C, H), dtype=jnp.float32) * 0.1,   # nn.Linear(H, C).weight
        "b1": jax.random.normal(k1b, (C,), dtype=jnp.float32) * 0.1,
    }

    out = pooler_end_logits(hidden_states, start_positions, params)
    out = jax.block_until_ready(out)

    ref = _reference(hidden_states, start_positions, params)
    assert out.shape == (B, S, C)
    assert jnp.allclose(out, ref, atol=1e-5, rtol=1e-5), "mismatch vs reference"

    print("KERNEL_OK")
</pallas_src>

<mosaic_0001>
module attributes {stable_mosaic.version = 11 : i64} {
  func.func @_pooler_end_logits_kernel(%arg0: i32, %arg1: memref<32x128xf32, #tpu.memory_space<vmem>>, %arg2: memref<32x32xf32, #tpu.memory_space<vmem>>, %arg3: memref<32x3xf32, #tpu.memory_space<vmem>>, %arg4: memref<8x32xf32, #tpu.memory_space<vmem>>, %arg5: memref<8x1xf32, #tpu.memory_space<vmem>>, %arg6: memref<8x128xf32, #tpu.memory_space<vmem>>) attributes {dimension_semantics = [#tpu.dimension_semantics<parallel>], iteration_bounds = array<i64: 1>, scalar_prefetch = 0 : i64, scratch_operands = 0 : i64, tpu.core_type = #tpu.core_type<tc>, window_params = [{transform_indices = @transform_0, window_bounds = array<i64: 32, 128>}, {pipeline_mode = #tpu.pipeline_mode<synchronous>, transform_indices = @transform_1, window_bounds = array<i64: 32, 32>}, {pipeline_mode = #tpu.pipeline_mode<synchronous>, transform_indices = @transform_2, window_bounds = array<i64: 32, 3>}, {pipeline_mode = #tpu.pipeline_mode<synchronous>, transform_indices = @transform_3, window_bounds = array<i64: 8, 32>}, {pipeline_mode = #tpu.pipeline_mode<synchronous>, transform_indices = @transform_4, window_bounds = array<i64: 8, 1>}, {transform_indices = @transform_5, window_bounds = array<i64: 8, 128>}]} {
    %c0 = arith.constant 0 : index
    %c0_0 = arith.constant 0 : index
    %0 = vector.load %arg2[%c0, %c0_0] : memref<32x32xf32, #tpu.memory_space<vmem>>, vector<32x32xf32>
    %c0_1 = arith.constant 0 : index
    %c0_2 = arith.constant 0 : index
    %1 = vector.load %arg1[%c0_1, %c0_2] : memref<32x128xf32, #tpu.memory_space<vmem>>, vector<32x128xf32>
    %cst = arith.constant dense<0.000000e+00> : vector<32x128xf32>
    %2 = tpu.matmul %0, %1, %cst {dimension_numbers = #tpu.dot_dimension_numbers<[1], [0], [0], [1], [0, 0, 1, 1], [], []>} : vector<32x32xf32>, vector<32x128xf32>, vector<32x128xf32> -> vector<32x128xf32>
    %c0_3 = arith.constant 0 : index
    %c0_4 = arith.constant 0 : index
    %3 = vector.load %arg3[%c0_3, %c0_4] : memref<32x3xf32, #tpu.memory_space<vmem>>, vector<32x1xf32>
    %c0_5 = arith.constant 0 : index
    %c1 = arith.constant 1 : index
    %4 = vector.load %arg3[%c0_5, %c1] : memref<32x3xf32, #tpu.memory_space<vmem>>, vector<32x1xf32>
    %c0_6 = arith.constant 0 : index
    %c2 = arith.constant 2 : index
    %5 = vector.load %arg3[%c0_6, %c2] : memref<32x3xf32, #tpu.memory_space<vmem>>, vector<32x1xf32>
    %6 = vector.broadcast %3 : vector<32x1xf32> to vector<32x128xf32>
    %7 = arith.addf %2, %6 : vector<32x128xf32>
    %8 = math.tanh %7 : vector<32x128xf32>
    %cst_7 = arith.constant dense<0.000000e+00> : vector<128xf32>
    %9 = vector.multi_reduction <add>, %8, %cst_7 [0] : vector<32x128xf32> to vector<128xf32>
    %10 = vector.shape_cast %9 : vector<128xf32> to vector<1x128xf32>
    %cst_8 = arith.constant 3.200000e+01 : f32
    %11 = vector.broadcast %cst_8 : f32 to vector<1x128xf32>
    %12 = arith.divf %10, %11 : vector<1x128xf32>
    %13 = vector.broadcast %12 : vector<1x128xf32> to vector<32x128xf32>
    %14 = arith.subf %8, %13 : vector<32x128xf32>
    %15 = arith.mulf %14, %14 : vector<32x128xf32>
    %cst_9 = arith.constant dense<0.000000e+00> : vector<128xf32>
    %16 = vector.multi_reduction <add>, %15, %cst_9 [0] : vector<32x128xf32> to vector<128xf32>
    %17 = vector.shape_cast %16 : vector<128xf32> to vector<1x128xf32>
    %cst_10 = arith.constant 3.200000e+01 : f32
    %18 = vector.broadcast %cst_10 : f32 to vector<1x128xf32>
    %19 = arith.divf %17, %18 : vector<1x128xf32>
    %20 = vector.broadcast %12 : vector<1x128xf32> to vector<32x128xf32>
    %21 = arith.subf %8, %20 : vector<32x128xf32>
    %cst_11 = arith.constant 9.99999974E-6 : f32
    %22 = vector.broadcast %cst_11 : f32 to vector<1x128xf32>
    %23 = arith.addf %19, %22 : vector<1x128xf32>
    %24 = math.rsqrt %23 : vector<1x128xf32>
    %25 = vector.broadcast %24 : vector<1x128xf32> to vector<32x128xf32>
    %26 = arith.mulf %21, %25 : vector<32x128xf32>
    %27 = vector.broadcast %4 : vector<32x1xf32> to vector<32x128xf32>
    %28 = arith.mulf %26, %27 : vector<32x128xf32>
    %29 = vector.broadcast %5 : vector<32x1xf32> to vector<32x128xf32>
    %30 = arith.addf %28, %29 : vector<32x128xf32>
    %c0_12 = arith.constant 0 : index
    %c0_13 = arith.constant 0 : index
    %31 = vector.load %arg4[%c0_12, %c0_13] : memref<8x32xf32, #tpu.memory_space<vmem>>, vector<8x32xf32>
    %cst_14 = arith.constant dense<0.000000e+00> : vector<8x128xf32>
    %32 = tpu.matmul %31, %30, %cst_14 {dimension_numbers = #tpu.dot_dimension_numbers<[1], [0], [0], [1], [0, 0, 1, 1], [], []>} : vector<8x32xf32>, vector<32x128xf32>, vector<8x128xf32> -> vector<8x128xf32>
    %c0_15 = arith.constant 0 : index
    %c0_16 = arith.constant 0 : index
    %33 = vector.load %arg5[%c0_15, %c0_16] : memref<8x1xf32, #tpu.memory_space<vmem>>, vector<8x1xf32>
    %34 = vector.broadcast %33 : vector<8x1xf32> to vector<8x128xf32>
    %35 = arith.addf %32, %34 : vector<8x128xf32>
    %c0_17 = arith.constant 0 : index
    %c0_18 = arith.constant 0 : index
    %36 = vector.load %arg6[%c0_17, %c0_18] : memref<8x128xf32, #tpu.memory_space<vmem>>, vector<8x128xf32>
    tpu.vector_store %arg6[%c0_17, %c0_18], %35 {strides = array<i32>} : memref<8x128xf32, #tpu.memory_space<vmem>>, vector<8x128xf32>,
    return
  }
  func.func @transform_0(%arg0: i32) -> (i32, i32) {
    %c0_i32 = arith.constant 0 : i32
    %c0_i32_0 = arith.constant 0 : i32
    return %c0_i32, %arg0 : i32, i32
  }
  func.func @transform_1(%arg0: i32) -> (i32, i32) {
    %c0_i32 = arith.constant 0 : i32
    %c0_i32_0 = arith.constant 0 : i32
    %c0_i32_1 = arith.constant 0 : i32
    return %c0_i32, %c0_i32_0 : i32, i32
  }
  func.func @transform_2(%arg0: i32) -> (i32, i32) {
    %c0_i32 = arith.constant 0 : i32
    %c0_i32_0 = arith.constant 0 : i32
    %c0_i32_1 = arith.constant 0 : i32
    return %c0_i32, %c0_i32_0 : i32, i32
  }
  func.func @transform_3(%arg0: i32) -> (i32, i32) {
    %c0_i32 = arith.constant 0 : i32
    %c0_i32_0 = arith.constant 0 : i32
    %c0_i32_1 = arith.constant 0 : i32
    return %c0_i32, %c0_i32_0 : i32, i32
  }
  func.func @transform_4(%arg0: i32) -> (i32, i32) {
    %c0_i32 = arith.constant 0 : i32
    %c0_i32_0 = arith.constant 0 : i32
    %c0_i32_1 = arith.constant 0 : i32
    return %c0_i32, %c0_i32_0 : i32, i32
  }
  func.func @transform_5(%arg0: i32) -> (i32, i32) {
    %c0_i32 = arith.constant 0 : i32
    %c0_i32_0 = arith.constant 0 : i32
    return %c0_i32, %arg0 : i32, i32
  }
}

</mosaic_0001>

<llo_original>
// kernel: pooler_end_logits.1
$region0: #{pooler_end_logits.1}
  #allocation0 [shape = 'u32[]', space=smem, size = 0x4, offset = 0x4, fixed_abs, tag = 'smem constant byte address 0x4 - core index']
  #allocation1 [shape = 'u32[144,128]{1,0:T(1,128)}', space=vmem, size = 0x12000, scoped, tag = 'internal scratch']
  %s0 = inlined_call_operand.vmem [shape: f32[32,128], index: 0, kind: input, shape index: {}]
  %s1 = inlined_call_operand.vmem [shape: f32[32,32], index: 1, kind: input, shape index: {}]
  %s2 = inlined_call_operand.vmem [shape: f32[32,3], index: 2, kind: input, shape index: {}]
  %s3 = inlined_call_operand.vmem [shape: f32[8,32], index: 3, kind: input, shape index: {}]
  %s4 = inlined_call_operand.vmem [shape: f32[8,1], index: 4, kind: input, shape index: {}]
  %s5 = inlined_call_operand.vmem [shape: f32[8,128], index: 5, kind: output, shape index: {}]
  %s6 = sld [smem:[#allocation0]]
  $region30: #{pooler_end_logits.1} parent=0
    _
  %s8 = ssub.s32 1, %s6
  %s9 = scalar_select 0, %s8, %s6
  // Predicated region
  $region2: #{pooler_end_logits.1} parent=0 // pred_check
    _
  $region3: #{pooler_end_logits.1} parent=0 // pred_check_branch
    %11 = sbr.rel (0) target = $region5
  $region4: #{pooler_end_logits.1} parent=0 // pred_region
    _
  $region5: #{pooler_end_logits.1} parent=0 // pred_fallthru
    _
  // Predicated region
  $region6: #{pooler_end_logits.1} parent=0 // pred_check
    _
  $region7: #{pooler_end_logits.1} parent=0 // pred_check_branch
    %13 = sbr.rel (0) target = $region9
  $region8: #{pooler_end_logits.1} parent=0 // pred_region
    _
  $region9: #{pooler_end_logits.1} parent=0 // pred_fallthru
    _
  // Predicated region
  $region10: #{pooler_end_logits.1} parent=0 // pred_check
    _
  $region11: #{pooler_end_logits.1} parent=0 // pred_check_branch
    %15 = sbr.rel (0) target = $region13
  $region12: #{pooler_end_logits.1} parent=0 // pred_region
    _
  $region13: #{pooler_end_logits.1} parent=0 // pred_fallthru
    _
  // Predicated region
  $region14: #{pooler_end_logits.1} parent=0 // pred_check
    _
  $region15: #{pooler_end_logits.1} parent=0 // pred_check_branch
    %17 = sbr.rel (0) target = $region17
  $region16: #{pooler_end_logits.1} parent=0 // pred_region
    _
  $region17: #{pooler_end_logits.1} parent=0 // pred_fallthru
    _
  // Predicated region
  $region18: #{pooler_end_logits.1} parent=0 // pred_check
    _
  $region19: #{pooler_end_logits.1} parent=0 // pred_check_branch
    %19 = sbr.rel (0) target = $region21
  $region20: #{pooler_end_logits.1} parent=0 // pred_region
    _
  $region21: #{pooler_end_logits.1} parent=0 // pred_fallthru
    _
  %v20 = vld [vmem:[%s1] sm:$0xff]
  %v21 = vld [vmem:[%s1 + $0x8] sm:$0xff]
  %v22 = vld [vmem:[%s1 + $0x10] sm:$0xff]
  %v23 = vld [vmem:[%s1 + $0x18] sm:$0xff]
  %v24 = vld [vmem:[%s0] sm:$0xff]
  %v25 = vld [vmem:[%s0 + $0x8] sm:$0xff]
  %v26 = vld [vmem:[%s0 + $0x10] sm:$0xff]
  %v27 = vld [vmem:[%s0 + $0x18] sm:$0xff]
  %v28 = vld [vmem:[%s2] sm:$0xff]
  %v29 = vld [vmem:[%s2 + $0x8] sm:$0xff]
  %v30 = vld [vmem:[%s2 + $0x10] sm:$0xff]
  %v31 = vld [vmem:[%s2 + $0x18] sm:$0xff]
  %33 = vset.pattern.permute.xlu0 0
  %34 = vperm.xlu0 %33, %v28
  %v35 = vpop.permute.xlu0 %34
  %38 = vset.pattern.permute.xlu0 0
  %39 = vperm.xlu0 %38, %v29
  %v40 = vpop.permute.xlu0 %39
  %43 = vset.pattern.permute.xlu0 0
  %44 = vperm.xlu0 %43, %v30
  %v45 = vpop.permute.xlu0 %44
  %48 = vset.pattern.permute.xlu0 0
  %49 = vperm.xlu0 %48, %v31
  %v50 = vpop.permute.xlu0 %49
  %vm52 = vcmask 261120
  %v54 = vsel %vm52, %v20, 0
  %v57 = vsel %vm52, %v21, 0
  %v60 = vsel %vm52, %v22, 0
  %v63 = vsel %vm52, %v23, 0
  %65 = vmatprep.subr.mxu0 0.0
  %66 = vmatpush1.msra.mxu0 %v24
  %67 = vmatprep.subr.mxu0 0.0
  %68 = vmatpush1.msra.mxu0 %v25
  %69 = vmatprep.subr.mxu0 0.0
  %70 = vmatpush1.msra.mxu0 %v26
  %71 = vmatprep.subr.mxu0 0.0
  %72 = vmatpush1.msra.mxu0 %v27
  %73 = vmatprep.subr.mxu0 0.0
  %74 = vmatpush1.msra.mxu0 0.0
  %75 = vmatprep.subr.mxu0 0.0
  %76 = vmatpush1.msra.mxu0 0.0
  %77 = vmatprep.subr.mxu0 0.0
  %78 = vmatpush1.msra.mxu0 0.0
  %79 = vmatprep.subr.mxu0 0.0
  %80 = vmatpush1.msra.mxu0 0.0
  %81 = vmatprep.subr.mxu0 0.0
  %82 = vmatpush1.msra.mxu0 0.0
  %83 = vmatprep.subr.mxu0 0.0
  %84 = vmatpush1.msra.mxu0 0.0
  %85 = vmatprep.subr.mxu0 0.0
  %86 = vmatpush1.msra.mxu0 0.0
  %87 = vmatprep.subr.mxu0 0.0
  %88 = vmatpush1.msra.mxu0 0.0
  %89 = vmatprep.subr.mxu0 0.0
  %90 = vmatpush1.msra.mxu0 0.0
  %91 = vmatprep.subr.mxu0 0.0
  %92 = vmatpush1.msra.mxu0 0.0
  %93 = vmatprep.subr.mxu0 0.0
  %94 = vmatpush1.msra.mxu0 0.0
  %95 = vmatprep.subr.mxu0 0.0
  %96 = vmatpush1.msra.mxu0 0.0
  %97 = vmatprep.subr.mxu0 0.0
  %98 = vmatpush1.msra.mxu0 0.0
  %99 = vmatprep.subr.mxu0 0.0
  %100 = vmatpush1.msra.mxu0 0.0
  %101 = vmatprep.subr.mxu0 0.0
  %102 = vmatpush1.msra.mxu0 0.0
  %103 = vmatprep.subr.mxu0 0.0
  %104 = vmatpush1.msra.mxu0 0.0
  %105 = vmatprep.subr.mxu0 0.0
  %106 = vmatpush1.msra.mxu0 0.0
  %107 = vmatprep.subr.mxu0 0.0
  %108 = vmatpush1.msra.mxu0 0.0
  %109 = vmatprep.subr.mxu0 0.0
  %110 = vmatpush1.msra.mxu0 0.0
  %111 = vmatprep.subr.mxu0 0.0
  %112 = vmatpush1.msra.mxu0 0.0
  %113 = vmatprep.subr.mxu0 0.0
  %114 = vmatpush1.msra.mxu0 0.0
  %115 = vmatprep.subr.mxu0 0.0
  %116 = vmatpush1.msra.mxu0 0.0
  %117 = vmatprep.subr.mxu0 0.0
  %118 = vmatpush1.msra.mxu0 0.0
  %119 = vmatprep.subr.mxu0 0.0
  %120 = vmatpush1.msra.mxu0 0.0
  %121 = vmatprep.subr.mxu0 0.0
  %122 = vmatpush1.msra.mxu0 0.0
  %123 = vmatprep.subr.mxu0 0.0
  %124 = vmatpush1.msra.mxu0 0.0
  %125 = vmatprep.subr.mxu0 0.0
  %126 = vmatpush1.msra.mxu0 0.0
  %127 = vmatprep.subr.mxu0 0.0
  %128 = vmatpush1.msra.mxu0 0.0
  %129 = vmatprep.mubr.f32.mxu0 0.0
  %130 = vmatmul.mubr.f32.gmra.mrb[0].mxu0 %v54
  %v131 = vpop.f32.mrb[0].mxu0
  %v132 = vadd.f32 %v35, %v131
  %v133 = vpop.f32.mrb[0].mxu0
  %134 = vmatprep.mubr.f32.mxu0 0.0
  %135 = vmatmul.mubr.f32.gmra.mrb[0].mxu0 %v57
  %v136 = vpop.f32.mrb[0].mxu0
  %v137 = vadd.f32 %v40, %v136
  %v138 = vpop.f32.mrb[0].mxu0
  %139 = vmatprep.mubr.f32.mxu0 0.0
  %140 = vmatmul.mubr.f32.gmra.mrb[0].mxu0 %v60
  %v141 = vpop.f32.mrb[0].mxu0
  %v142 = vadd.f32 %v45, %v141
  %v143 = vpop.f32.mrb[0].mxu0
  %144 = vmatprep.mubr.f32.mxu0 0.0
  %145 = vmatmul.mubr.f32.gmra.mrb[0].mxu0 %v63
  %v146 = vpop.f32.mrb[0].mxu0
  %v147 = vadd.f32 %v50, %v146
  %v148 = vpop.f32.mrb[0].mxu0
  %149 = vdwg.mxu0
  %v150 = vtanh.pop %v132
  %v151 = vtanh.pop %v137
  %v152 = vtanh.pop %v142
  %v153 = vtanh.pop %v147
  %v154 = vadd.f32 %v150, %v151
  %v155 = vadd.f32 %v154, %v152
  %v156 = vadd.f32 %v155, %v153
  %v157 = vrot.slane %v156, 4
  %v158 = vadd.f32 %v156, %v157
  %v159 = vrot.slane %v158, 2
  %v160 = vadd.f32 %v158, %v159
  %v161 = vrot.slane %v160, 1
  %v162 = vadd.f32 %v160, %v161
  %v163 = vrcp.pop 32.0
  %v164 = vmul.f32 %v162, %v163
  %v165 = vsub.f32 %v150, %v164
  %v166 = vsub.f32 %v151, %v164
  %v167 = vsub.f32 %v152, %v164
  %v168 = vsub.f32 %v153, %v164
  %v169 = vmul.f32 %v165, %v165
  %v170 = vmul.f32 %v166, %v166
  %v171 = vmul.f32 %v167, %v167
  %v172 = vmul.f32 %v168, %v168
  %v173 = vadd.f32 %v169, %v170
  %v174 = vadd.f32 %v173, %v171
  %v175 = vadd.f32 %v174, %v172
  %v176 = vrot.slane %v175, 4
  %v177 = vadd.f32 %v175, %v176
  %v178 = vrot.slane %v177, 2
  %v179 = vadd.f32 %v177, %v178
  %v180 = vrot.slane %v179, 1
  %v181 = vadd.f32 %v179, %v180
  %v182 = vmul.f32 %v181, %v163
  %v183 = vadd.f32 %v182, 1e-05
  %v184 = vrsqrt.pop %v183
  %v185 = vmul.f32 %v165, %v184
  %v186 = vmul.f32 %v166, %v184
  %v187 = vmul.f32 %v167, %v184
  %v188 = vmul.f32 %v168, %v184
  %189 = vset.pattern.permute.xlu0 1
  %190 = vperm.xlu0 %189, %v28
  %v191 = vpop.permute.xlu0 %190
  %193 = vset.pattern.permute.xlu0 1
  %194 = vperm.xlu0 %193, %v29
  %v195 = vpop.permute.xlu0 %194
  %197 = vset.pattern.permute.xlu0 1
  %198 = vperm.xlu0 %197, %v30
  %v199 = vpop.permute.xlu0 %198
  %201 = vset.pattern.permute.xlu0 1
  %202 = vperm.xlu0 %201, %v31
  %v203 = vpop.permute.xlu0 %202
  %v205 = vmul.f32 %v185, %v191
  %v206 = vmul.f32 %v186, %v195
  %v207 = vmul.f32 %v187, %v199
  %v208 = vmul.f32 %v188, %v203
  %209 = vset.pattern.permute.xlu0 2
  %210 = vperm.xlu0 %209, %v28
  %v211 = vpop.permute.xlu0 %210
  %213 = vset.pattern.permute.xlu0 2
  %214 = vperm.xlu0 %213, %v29
  %v215 = vpop.permute.xlu0 %214
  %217 = vset.pattern.permute.xlu0 2
  %218 = vperm.xlu0 %217, %v30
  %v219 = vpop.permute.xlu0 %218
  %221 = vset.pattern.permute.xlu0 2
  %222 = vperm.xlu0 %221, %v31
  %v223 = vpop.permute.xlu0 %222
  %v225 = vadd.f32 %v205, %v211
  %v226 = vadd.f32 %v206, %v215
  %v227 = vadd.f32 %v207, %v219
  %v228 = vadd.f32 %v208, %v223
  %v229 = vld [vmem:[%s3] sm:$0xff]
  %v230 = vld [vmem:[%s4] sm:$0xff]
  %232 = vset.pattern.permute.xlu0 0
  %233 = vperm.xlu0 %232, %v230
  %v234 = vpop.permute.xlu0 %233
  %v237 = vsel %vm52, %v229, 0
  %239 = vmatprep.subr.mxu0 0.0
  %240 = vmatpush1.msra.mxu0 %v225
  %241 = vmatprep.subr.mxu0 0.0
  %242 = vmatpush1.msra.mxu0 %v226
  %243 = vmatprep.subr.mxu0 0.0
  %244 = vmatpush1.msra.mxu0 %v227
  %245 = vmatprep.subr.mxu0 0.0
  %246 = vmatpush1.msra.mxu0 %v228
  %247 = vmatprep.subr.mxu0 0.0
  %248 = vmatpush1.msra.mxu0 0.0
  %249 = vmatprep.subr.mxu0 0.0
  %250 = vmatpush1.msra.mxu0 0.0
  %251 = vmatprep.subr.mxu0 0.0
  %252 = vmatpush1.msra.mxu0 0.0
  %253 = vmatprep.subr.mxu0 0.0
  %254 = vmatpush1.msra.mxu0 0.0
  %255 = vmatprep.subr.mxu0 0.0
  %256 = vmatpush1.msra.mxu0 0.0
  %257 = vmatprep.subr.mxu0 0.0
  %258 = vmatpush1.msra.mxu0 0.0
  %259 = vmatprep.subr.mxu0 0.0
  %260 = vmatpush1.msra.mxu0 0.0
  %261 = vmatprep.subr.mxu0 0.0
  %262 = vmatpush1.msra.mxu0 0.0
  %263 = vmatprep.subr.mxu0 0.0
  %264 = vmatpush1.msra.mxu0 0.0
  %265 = vmatprep.subr.mxu0 0.0
  %266 = vmatpush1.msra.mxu0 0.0
  %267 = vmatprep.subr.mxu0 0.0
  %268 = vmatpush1.msra.mxu0 0.0
  %269 = vmatprep.subr.mxu0 0.0
  %270 = vmatpush1.msra.mxu0 0.0
  %271 = vmatprep.subr.mxu0 0.0
  %272 = vmatpush1.msra.mxu0 0.0
  %273 = vmatprep.subr.mxu0 0.0
  %274 = vmatpush1.msra.mxu0 0.0
  %275 = vmatprep.subr.mxu0 0.0
  %276 = vmatpush1.msra.mxu0 0.0
  %277 = vmatprep.subr.mxu0 0.0
  %278 = vmatpush1.msra.mxu0 0.0
  %279 = vmatprep.subr.mxu0 0.0
  %280 = vmatpush1.msra.mxu0 0.0
  %281 = vmatprep.subr.mxu0 0.0
  %282 = vmatpush1.msra.mxu0 0.0
  %283 = vmatprep.subr.mxu0 0.0
  %284 = vmatpush1.msra.mxu0 0.0
  %285 = vmatprep.subr.mxu0 0.0
  %286 = vmatpush1.msra.mxu0 0.0
  %287 = vmatprep.subr.mxu0 0.0
  %288 = vmatpush1.msra.mxu0 0.0
  %289 = vmatprep.subr.mxu0 0.0
  %290 = vmatpush1.msra.mxu0 0.0
  %291 = vmatprep.subr.mxu0 0.0
  %292 = vmatpush1.msra.mxu0 0.0
  %293 = vmatprep.subr.mxu0 0.0
  %294 = vmatpush1.msra.mxu0 0.0
  %295 = vmatprep.subr.mxu0 0.0
  %296 = vmatpush1.msra.mxu0 0.0
  %297 = vmatprep.subr.mxu0 0.0
  %298 = vmatpush1.msra.mxu0 0.0
  %299 = vmatprep.subr.mxu0 0.0
  %300 = vmatpush1.msra.mxu0 0.0
  %301 = vmatprep.subr.mxu0 0.0
  %302 = vmatpush1.msra.mxu0 0.0
  %303 = vmatprep.mubr.f32.mxu0 0.0
  %304 = vmatmul.mubr.f32.gmra.mrb[0].mxu0 %v237
  %v305 = vpop.f32.mrb[0].mxu0
  %v306 = vadd.f32 %v234, %v305
  %v307 = vpop.f32.mrb[0].mxu0
  %308 = vdwg.mxu0
  %309 = vst [vmem:[%s5] sm:$0xff] %v306
  // Predicated region
  $region22: #{pooler_end_logits.1} parent=0 // pred_check
    _
  $region23: #{pooler_end_logits.1} parent=0 // pred_check_branch
    %311 = sbr.rel (0) target = $region25
  $region24: #{pooler_end_logits.1} parent=0 // pred_region
    _
  $region25: #{pooler_end_logits.1} parent=0 // pred_fallthru
    _
  // Predicated region
  $region26: #{pooler_end_logits.1} parent=0 // pred_check
    _
  $region27: #{pooler_end_logits.1} parent=0 // pred_check_branch
    %313 = sbr.rel (0) target = $region29
  $region28: #{pooler_end_logits.1} parent=0 // pred_region
    _
  $region29: #{pooler_end_logits.1} parent=0 // pred_fallthru
    _

</llo_original>
